<compile_context>
chip_gen: v7x
topology: tpu7x:2x2x1
jax: 0.10.0
libtpu: 0.0.40
codegen_flags: <defaults>
</compile_context>

<pallas_src>
import functools

import jax
import jax.numpy as jnp
from jax.experimental import pallas as pl
from jax.experimental.pallas import tpu as pltpu


_COMPUTE_DTYPE = jnp.bfloat16          # MXU-native input dtype
_BN_EPS = 1e-5
_VMEM_LIMIT = 32 * 1024 * 1024         # safe on v7x (64 MiB physical VMEM)


def _is_v5():
    try:
        return "v5" in jax.devices()[0].device_kind.lower()
    except Exception:
        return False


_V5 = _is_v5()


# ----------------------------- Pallas kernels ------------------------------

def _conv_mm_kernel(a_ref, w_ref, s_ref, b_ref, o_ref, *, relu):
    # A @ W -> * scale + bias -> (ReLU); f32 accumulation on the MXU.
    acc = jnp.dot(a_ref[...], w_ref[...], preferred_element_type=jnp.float32)
    acc = acc * s_ref[...] + b_ref[...]
    if relu:
        acc = jnp.maximum(acc, 0.0)
    o_ref[...] = acc.astype(o_ref.dtype)


def _conv_mm_res_kernel(a_ref, w_ref, s_ref, b_ref, r_ref, o_ref, *, relu):
    # A @ W -> * scale + bias -> + residual -> (ReLU).
    acc = jnp.dot(a_ref[...], w_ref[...], preferred_element_type=jnp.float32)
    acc = acc * s_ref[...] + b_ref[...] + r_ref[...].astype(jnp.float32)
    if relu:
        acc = jnp.maximum(acc, 0.0)
    o_ref[...] = acc.astype(o_ref.dtype)


def _affine_kernel(x_ref, s_ref, b_ref, o_ref, *, relu):
    y = x_ref[...].astype(jnp.float32) * s_ref[...] + b_ref[...]
    if relu:
        y = jnp.maximum(y, 0.0)
    o_ref[...] = y.astype(o_ref.dtype)


def _relu_kernel(x_ref, o_ref):
    x = x_ref[...]
    o_ref[...] = jnp.maximum(x, jnp.zeros_like(x))


def _maxpool_kernel(p_ref, o_ref):
    # p_ref: (kh*kw, TM, C) -> max over the window axis
    o_ref[...] = jnp.max(p_ref[...], axis=0)


# ------------------------------- glue helpers ------------------------------

def _round_up(x, m):
    return (x + m - 1) // m * m


def _pick_m_tiles(M, tm_target):
    """Choose (Mp, TM, num_tiles) so Mp % TM == 0 and TM % 8 == 0."""
    Mp = _round_up(M, 8)
    if Mp <= tm_target:
        return Mp, Mp, 1
    Mp = _round_up(M, tm_target)
    return Mp, tm_target, Mp // tm_target


def _pick_tn(cout):
    # v6e/v7x MXU is 256 wide; v5e saturates at 128.
    if (not _V5) and cout % 256 == 0:
        return 256
    if cout % 128 == 0:
        return 128
    return cout


def _im2col_stack(x, kh, kw, stride, pad, pad_value=0.0):
    """x: (N,H,W,C) -> stacked patches (kh*kw, N, Ho, Wo, C)."""
    N, H, W, C = x.shape
    xp = jnp.pad(x, ((0, 0), (pad, pad), (pad, pad), (0, 0)),
                 constant_values=pad_value)
    Ho = (H + 2 * pad - kh) // stride + 1
    Wo = (W + 2 * pad - kw) // stride + 1
    cols = []
    for i in range(kh):
        for j in range(kw):
            cols.append(xp[:, i:i + stride * Ho:stride,
                           j:j + stride * Wo:stride, :])
    return jnp.stack(cols, axis=0), Ho, Wo


def conv_bn_act(x, w, scale, bias, stride, pad, relu, residual=None):
    """x: (N,H,W,Cin) NHWC bf16, w: (Cout,Cin,kh,kw) torch layout -> NHWC bf16."""
    N, H, W_, Cin = x.shape
    Cout, _, kh, kw = w.shape
    stack, Ho, Wo = _im2col_stack(x, kh, kw, stride, pad)
    M = N * Ho * Wo
    K = kh * kw * Cin
    Kp = _round_up(K, 128)

    A = jnp.transpose(stack, (1, 2, 3, 0, 4)).reshape(M, K).astype(_COMPUTE_DTYPE)
    Wm = jnp.transpose(w, (2, 3, 1, 0)).reshape(K, Cout).astype(_COMPUTE_DTYPE)
    if Kp != K:
        A = jnp.pad(A, ((0, 0), (0, Kp - K)))
        Wm = jnp.pad(Wm, ((0, Kp - K), (0, 0)))

    Mp, TM, m_tiles = _pick_m_tiles(M, 256)
    A = jnp.pad(A, ((0, Mp - M), (0, 0)))

    TN = _pick_tn(Cout)
    n_tiles = Cout // TN

    s2 = scale.reshape(1, Cout).astype(jnp.float32)
    b2 = bias.reshape(1, Cout).astype(jnp.float32)

    bytes_acc = 2 * (Mp * Kp + Kp * Cout + Mp * Cout)
    if residual is not None:
        bytes_acc += 2 * Mp * Cout
    cost = pl.CostEstimate(flops=2 * Mp * Kp * Cout, transcendentals=0,
                           bytes_accessed=int(bytes_acc))
    cparams = pltpu.CompilerParams(
        dimension_semantics=("parallel", "parallel"),
        vmem_limit_bytes=_VMEM_LIMIT,
    )

    a_spec = pl.BlockSpec((TM, Kp), lambda m, j: (m, 0))
    w_spec = pl.BlockSpec((Kp, TN), lambda m, j: (0, j))
    v_spec = pl.BlockSpec((1, TN), lambda m, j: (0, j))
    o_spec = pl.BlockSpec((TM, TN), lambda m, j: (m, j))

    if residual is None:
        out = pl.pallas_call(
            functools.partial(_conv_mm_kernel, relu=relu),
            out_shape=jax.ShapeDtypeStruct((Mp, Cout), _COMPUTE_DTYPE),
            grid=(m_tiles, n_tiles),
            in_specs=[a_spec, w_spec, v_spec, v_spec],
            out_specs=o_spec,
            compiler_params=cparams,
            cost_estimate=cost,
        )(A, Wm, s2, b2)
    else:
        R = residual.reshape(M, Cout).astype(_COMPUTE_DTYPE)
        R = jnp.pad(R, ((0, Mp - M), (0, 0)))
        out = pl.pallas_call(
            functools.partial(_conv_mm_res_kernel, relu=relu),
            out_shape=jax.ShapeDtypeStruct((Mp, Cout), _COMPUTE_DTYPE),
            grid=(m_tiles, n_tiles),
            in_specs=[a_spec, w_spec, v_spec, v_spec, o_spec],
            out_specs=o_spec,
            compiler_params=cparams,
            cost_estimate=cost,
        )(A, Wm, s2, b2, R)
    return out[:M].reshape(N, Ho, Wo, Cout)


def affine_act(x, scale, bias, relu):
    """Per-channel affine (+ ReLU) on NHWC tensor, tiled over rows."""
    N, H, W_, C = x.shape
    M = N * H * W_
    Mp, TM, m_tiles = _pick_m_tiles(M, 512)
    xf = jnp.pad(x.reshape(M, C).astype(_COMPUTE_DTYPE), ((0, Mp - M), (0, 0)))
    s2 = scale.reshape(1, C).astype(jnp.float32)
    b2 = bias.reshape(1, C).astype(jnp.float32)
    out = pl.pallas_call(
        functools.partial(_affine_kernel, relu=relu),
        out_shape=jax.ShapeDtypeStruct((Mp, C), _COMPUTE_DTYPE),
        grid=(m_tiles,),
        in_specs=[pl.BlockSpec((TM, C), lambda m: (m, 0)),
                  pl.BlockSpec((1, C), lambda m: (0, 0)),
                  pl.BlockSpec((1, C), lambda m: (0, 0))],
        out_specs=pl.BlockSpec((TM, C), lambda m: (m, 0)),
        compiler_params=pltpu.CompilerParams(
            dimension_semantics=("parallel",),
            vmem_limit_bytes=_VMEM_LIMIT),
    )(xf, s2, b2)
    return out[:M].reshape(N, H, W_, C)


def relu_act(x):
    """Standalone ReLU (no dummy scale/bias streams), tiled over rows."""
    N, H, W_, C = x.shape
    M = N * H * W_
    Mp, TM, m_tiles = _pick_m_tiles(M, 512)
    xf = jnp.pad(x.reshape(M, C).astype(_COMPUTE_DTYPE), ((0, Mp - M), (0, 0)))
    out = pl.pallas_call(
        _relu_kernel,
        out_shape=jax.ShapeDtypeStruct((Mp, C), _COMPUTE_DTYPE),
        grid=(m_tiles,),
        in_specs=[pl.BlockSpec((TM, C), lambda m: (m, 0))],
        out_specs=pl.BlockSpec((TM, C), lambda m: (m, 0)),
        compiler_params=pltpu.CompilerParams(
            dimension_semantics=("parallel",),
            vmem_limit_bytes=_VMEM_LIMIT),
    )(xf)
    return out[:M].reshape(N, H, W_, C)


def maxpool_3x3_s2_p1(x):
    """torch.nn.MaxPool2d(3, stride=2, padding=1) on NHWC, tiled over rows."""
    N, H, W_, C = x.shape
    x = x.astype(_COMPUTE_DTYPE)
    stack, Ho, Wo = _im2col_stack(x, 3, 3, 2, 1, pad_value=-jnp.inf)
    M = N * Ho * Wo
    Mp, TM, m_tiles = _pick_m_tiles(M, 512)
    P = jnp.pad(stack.reshape(9, M, C), ((0, 0), (0, Mp - M), (0, 0)),
                constant_values=-jnp.inf)
    out = pl.pallas_call(
        _maxpool_kernel,
        out_shape=jax.ShapeDtypeStruct((Mp, C), _COMPUTE_DTYPE),
        grid=(m_tiles,),
        in_specs=[pl.BlockSpec((9, TM, C), lambda m: (0, m, 0))],
        out_specs=pl.BlockSpec((TM, C), lambda m: (m, 0)),
        compiler_params=pltpu.CompilerParams(
            dimension_semantics=("parallel",),
            vmem_limit_bytes=_VMEM_LIMIT),
    )(P)
    return out[:M].reshape(N, Ho, Wo, C)


# --------------------------- parameters (synthetic) -------------------------

def _init_conv(key, cout, cin, kh, kw):
    fan_in = cin * kh * kw
    return (jax.random.normal(key, (cout, cin, kh, kw), jnp.float32)
            * jnp.sqrt(2.0 / fan_in))


def _init_bn(key, c):
    k1, k2, k3, k4 = jax.random.split(key, 4)
    gamma = 1.0 + 0.1 * jax.random.normal(k1, (c,), jnp.float32)
    beta = 0.1 * jax.random.normal(k2, (c,), jnp.float32)
    mean = 0.1 * jax.random.normal(k3, (c,), jnp.float32)
    var = 1.0 + 0.1 * jnp.abs(jax.random.normal(k4, (c,), jnp.float32))
    return (gamma, beta, mean, var)


def _fold_bn(bn):
    gamma, beta, mean, var = bn
    scale = gamma / jnp.sqrt(var + _BN_EPS)
    bias = beta - mean * scale
    return scale, bias


def init_resnet18_params(key):
    keys = iter(jax.random.split(key, 256))
    params = {
        "conv1": _init_conv(next(keys), 64, 3, 7, 7),
        "bn1": _init_bn(next(keys), 64),
        "layers": [],
    }
    inplanes = 64
    for planes, stride in [(64, 1), (128, 2), (256, 2), (512, 2)]:
        blocks = []
        for b in range(2):
            s = stride if b == 0 else 1
            blk = {
                "stride": s,
                "conv1": _init_conv(next(keys), planes, inplanes, 3, 3),
                "bn1": _init_bn(next(keys), planes),
                "conv2": _init_conv(next(keys), planes, planes, 3, 3),
                "bn2": _init_bn(next(keys), planes),
            }
            if s != 1 or inplanes != planes:
                blk["down_conv"] = _init_conv(next(keys), planes, inplanes, 1, 1)
                blk["down_bn"] = _init_bn(next(keys), planes)
            blocks.append(blk)
            inplanes = planes
        params["layers"].append(blocks)
    return params


# ------------------------------- forward pass -------------------------------

def _basic_block(x, blk):
    s = blk["stride"]
    sc1, b1 = _fold_bn(blk["bn1"])
    out = conv_bn_act(x, blk["conv1"], sc1, b1, s, 1, relu=True)
    if "down_conv" in blk:
        sd, bd = _fold_bn(blk["down_bn"])
        identity = conv_bn_act(x, blk["down_conv"], sd, bd, s, 0, relu=False)
    else:
        identity = x
    sc2, b2 = _fold_bn(blk["bn2"])
    # bn2 + residual add + relu fused into the conv2 matmul kernel
    return conv_bn_act(out, blk["conv2"], sc2, b2, 1, 1, relu=True,
                       residual=identity)


def _make_features(params):
    """The 8 top-level children of torchvision ResNet18 (minus avgpool/fc)."""
    C64_one = jnp.ones((64,), jnp.float32)
    C64_zero = jnp.zeros((64,), jnp.float32)
    bn1_scale, bn1_bias = _fold_bn(params["bn1"])

    def conv1(x):    # nn.Conv2d(3, 64, 7, stride=2, padding=3, bias=False)
        return conv_bn_act(x, params["conv1"], C64_one, C64_zero, 2, 3, relu=False)

    def bn1(x):      # nn.BatchNorm2d(64) in eval mode (running stats)
        return affine_act(x, bn1_scale, bn1_bias, relu=False)

    def bn1_relu(x):  # fused bn1 + relu (used when adjacent within a slice)
        return affine_act(x, bn1_scale, bn1_bias, relu=True)

    def relu(x):     # nn.ReLU
        return relu_act(x)

    def maxpool(x):  # nn.MaxPool2d(3, 2, 1)
        return maxpool_3x3_s2_p1(x)

    def make_layer(blocks):
        def layer(x):
            for blk in blocks:
                x = _basic_block(x, blk)
            return x
        return layer

    features = [("conv1", conv1), ("bn1", bn1), ("relu", relu),
                ("maxpool", maxpool)]
    features += [("layer%d" % (i + 1), make_layer(b))
                 for i, b in enumerate(params["layers"])]
    fused = {("bn1", "relu"): bn1_relu}
    return features, fused


def _run_slice(x, feats, fused):
    i = 0
    while i < len(feats):
        name, fn = feats[i]
        if i + 1 < len(feats) and (name, feats[i + 1][0]) in fused:
            x = fused[(name, feats[i + 1][0])](x)
            i += 2
        else:
            x = fn(x)
            i += 1
    return x


def resnet18_forward(x_nchw, params, outputs_indices):
    """Mirrors ResNet18.forward: returns list of intermediate features (NCHW)."""
    features, fused = _make_features(params)
    indices = [0] + list(outputs_indices)
    x = jnp.transpose(x_nchw, (0, 2, 3, 1)).astype(_COMPUTE_DTYPE)  # NCHW->NHWC
    out = []
    for i in range(len(indices) - 1):
        x = _run_slice(x, features[indices[i]:indices[i + 1]], fused)
        out.append(jnp.transpose(x, (0, 3, 1, 2)).astype(jnp.float32))  # NCHW
    return out


# ----------------------------------- main -----------------------------------

if __name__ == "__main__":
    key = jax.random.PRNGKey(0)
    kx, kp = jax.random.split(key)
    x = jax.random.normal(kx, (2, 3, 32, 32), jnp.float32)  # NCHW input
    params = init_resnet18_params(kp)

    # slice points into [conv1, bn1, relu, maxpool, layer1..layer4]
    outputs_indices = [1, 4, 6, 8]

    outs = resnet18_forward(x, params, outputs_indices)
    outs = [jax.block_until_ready(o) for o in outs]

    expected_shapes = [(2, 64, 16, 16), (2, 64, 8, 8),
                       (2, 128, 4, 4), (2, 512, 1, 1)]
    assert [tuple(o.shape) for o in outs] == expected_shapes
    assert all(bool(jnp.all(jnp.isfinite(o))) for o in outs)
    print("KERNEL_OK")
</pallas_src>

<mosaic_0001>
module attributes {stable_mosaic.version = 11 : i64} {
  func.func @_conv_mm_kernel(%arg0: i32, %arg1: i32, %arg2: memref<256x256xbf16, #tpu.memory_space<vmem>>, %arg3: memref<256x64xbf16, #tpu.memory_space<vmem>>, %arg4: memref<1x64xf32, #tpu.memory_space<vmem>>, %arg5: memref<1x64xf32, #tpu.memory_space<vmem>>, %arg6: memref<256x64xbf16, #tpu.memory_space<vmem>>) attributes {dimension_semantics = [#tpu.dimension_semantics<parallel>, #tpu.dimension_semantics<parallel>], iteration_bounds = array<i64: 2, 1>, scalar_prefetch = 0 : i64, scratch_operands = 0 : i64, tpu.core_type = #tpu.core_type<tc>, window_params = [{transform_indices = @transform_0, window_bounds = array<i64: 256, 256>}, {transform_indices = @transform_1, window_bounds = array<i64: 256, 64>}, {transform_indices = @transform_2, window_bounds = array<i64: 1, 64>}, {transform_indices = @transform_3, window_bounds = array<i64: 1, 64>}, {transform_indices = @transform_4, window_bounds = array<i64: 256, 64>}]} {
    %c0 = arith.constant 0 : index
    %c0_0 = arith.constant 0 : index
    %0 = vector.load %arg2[%c0, %c0_0] : memref<256x256xbf16, #tpu.memory_space<vmem>>, vector<256x256xbf16>
    %c0_1 = arith.constant 0 : index
    %c0_2 = arith.constant 0 : index
    %1 = vector.load %arg3[%c0_1, %c0_2] : memref<256x64xbf16, #tpu.memory_space<vmem>>, vector<256x64xbf16>
    %cst = arith.constant dense<0.000000e+00> : vector<256x64xf32>
    %2 = tpu.matmul %0, %1, %cst {dimension_numbers = #tpu.dot_dimension_numbers<[1], [0], [0], [1], [0, 0, 1, 1], [], []>} : vector<256x256xbf16>, vector<256x64xbf16>, vector<256x64xf32> -> vector<256x64xf32>
    %c0_3 = arith.constant 0 : index
    %c0_4 = arith.constant 0 : index
    %3 = vector.load %arg4[%c0_3, %c0_4] : memref<1x64xf32, #tpu.memory_space<vmem>>, vector<1x64xf32>
    %4 = vector.broadcast %3 : vector<1x64xf32> to vector<256x64xf32>
    %5 = arith.mulf %2, %4 : vector<256x64xf32>
    %c0_5 = arith.constant 0 : index
    %c0_6 = arith.constant 0 : index
    %6 = vector.load %arg5[%c0_5, %c0_6] : memref<1x64xf32, #tpu.memory_space<vmem>>, vector<1x64xf32>
    %7 = vector.broadcast %6 : vector<1x64xf32> to vector<256x64xf32>
    %8 = arith.addf %5, %7 : vector<256x64xf32>
    %9 = arith.truncf %8 : vector<256x64xf32> to vector<256x64xbf16>
    %c0_7 = arith.constant 0 : index
    %c0_8 = arith.constant 0 : index
    %10 = vector.load %arg6[%c0_7, %c0_8] : memref<256x64xbf16, #tpu.memory_space<vmem>>, vector<256x64xbf16>
    tpu.vector_store %arg6[%c0_7, %c0_8], %9 {strides = array<i32>} : memref<256x64xbf16, #tpu.memory_space<vmem>>, vector<256x64xbf16>,
    return
  }
  func.func @transform_0(%arg0: i32, %arg1: i32) -> (i32, i32) {
    %c0_i32 = arith.constant 0 : i32
    %c0_i32_0 = arith.constant 0 : i32
    return %arg0, %c0_i32 : i32, i32
  }
  func.func @transform_1(%arg0: i32, %arg1: i32) -> (i32, i32) {
    %c0_i32 = arith.constant 0 : i32
    %c0_i32_0 = arith.constant 0 : i32
    return %c0_i32, %arg1 : i32, i32
  }
  func.func @transform_2(%arg0: i32, %arg1: i32) -> (i32, i32) {
    %c0_i32 = arith.constant 0 : i32
    %c0_i32_0 = arith.constant 0 : i32
    return %c0_i32, %arg1 : i32, i32
  }
  func.func @transform_3(%arg0: i32, %arg1: i32) -> (i32, i32) {
    %c0_i32 = arith.constant 0 : i32
    %c0_i32_0 = arith.constant 0 : i32
    return %c0_i32, %arg1 : i32, i32
  }
  func.func @transform_4(%arg0: i32, %arg1: i32) -> (i32, i32) {
    %c0_i32 = arith.constant 0 : i32
    return %arg0, %arg1 : i32, i32
  }
}

</mosaic_0001>

<llo_original>
// kernel: tpu_custom_call.1
$region0: #{tpu_custom_call.1}
  #allocation0 [shape = 'u32[]', space=smem, size = 0x4, offset = 0x4, fixed_abs, tag = 'smem constant byte address 0x4 - core index']
  #allocation1 [shape = 'u32[144,128]{1,0:T(1,128)}', space=vmem, size = 0x12000, scoped, tag = 'internal scratch']
  %s0 = inlined_call_operand.hbm [shape: bf16[512,256], index: 0, kind: input, shape index: {}]
  %s1 = inlined_call_operand.vmem [shape: bf16[256,64], index: 1, kind: input, shape index: {}]
  %s2 = inlined_call_operand.vmem [shape: f32[1,64], index: 2, kind: input, shape index: {}]
  %s3 = inlined_call_operand.vmem [shape: f32[1,64], index: 3, kind: input, shape index: {}]
  %s4 = inlined_call_operand.vmem [shape: bf16[512,64], index: 4, kind: output, shape index: {}]
  %s5 = sld [smem:[#allocation0]]
  $region53: #{tpu_custom_call.1} parent=0
    _
  %s7 = ssub.s32 1, %s5
  %s8 = scalar_select 0, %s7, %s5
  $region1: #{tpu_custom_call.1} parent=0
    #allocation2 [shape = 'u8[262144]{0}', space=vmem, size = 0x40000, scoped, tag = 'input window, operand 0']
    #allocation3 [shape = 's32[2]{0}', space=sflag, size = 0x8, scoped, tag = 'scoped memory for tpu_custom_call.1']
    %9 = vsyncpa [#allocation3], 0
    %s10 = scalar_lea.sflag [#allocation3], 1
    %11 = vsyncpa %s10, 0
    loop: start=0, step=1, limit=4
    $region2: #{tpu_custom_call.1} parent=1 // loop_pre_header
      _
    $region3: #{tpu_custom_call.1} parent=1 // loop_header
      %s13 = sphi 0, %s17
      %p14 = scmp.ge.s32.totalorder %s13, 4
      %s20 = sphi 0, %s32
      %s21 = sphi 0, %s28
      %s22 = sphi 0, %s20
      %s23 = sphi 0, %s21
      %s24 = sphi 0, %s22
      %s25 = sphi 0, %s23
      %s35 = sphi 0, %s37
      %s38 = sphi 0, %s35
      %s39 = sphi 0, %s38
      %s55 = sphi 0, %s39
      %s61 = sphi 0, %s63
      %s64 = sphi 0, %s61
      %s65 = sphi 0, %s64
      %s81 = sphi 0, %s65
      %s87 = sphi 0, %s89
      %s90 = sphi 0, %s87
      %s91 = sphi 0, %s90
      %s107 = sphi 0, %s91
      %s113 = sphi 0, %s115
      %s116 = sphi 0, %s113
      %s117 = sphi 0, %s116
      %s133 = sphi 0, %s117
      %s141 = sphi 0, %s143
      %s144 = sphi 0, %s141
      %s145 = sphi 0, %s144
      %s161 = sphi 0, %s145
    $region4: #{tpu_custom_call.1} parent=1 // loop_header_branch
      %16 = sbr.rel (%p14) target = $region8
    $region5: #{tpu_custom_call.1} parent=1 // loop_body
      %s18 = ssub.s32 %s13, 1
      %s19 = ssub.s32 %s13, 2
      %s26 = sadd.s32 1, %s21
      %p27 = scmp.ge.s32.totalorder %s26, 1
      %s28 = scalar_select %p27, 0, %s26
      %s29 = sadd.s32 1, %s20
      %s30 = scalar_select %p27, %s29, %s20
      %p31 = scmp.ge.s32.totalorder %s30, 2
      %s32 = scalar_select %p31, 0, %s30
      %s33 = ssub.s32 %s20, %s32
      %p34 = scmp.eq.s32.totalorder %s33, 0
      %s36 = sadd.s32 %s35, 1
      %s37 = scalar_select %p34, %s35, %s36
      %p40 = pneg %p34
      %p41 = scmp.eq.s32.totalorder %s13, 1
      %p42 = por %p40, %p41
      %p43 = scmp.ne.s32.totalorder %s35, %s38
      %p44 = scmp.eq.s32.totalorder %s13, 0
      %p45 = por %p43, %p44
      %p46 = scmp.ne.s32.totalorder %s35, %s38
      %p47 = scmp.eq.s32.totalorder %s18, 1
      %p48 = por %p46, %p47
      %p49 = scmp.ne.s32.totalorder %s38, %s39
      %p50 = scmp.eq.s32.totalorder %s18, 0
      %p51 = por %p49, %p50
      %p52 = scmp.ne.s32.totalorder %s38, %s39
      %p53 = scmp.eq.s32.totalorder %s19, 1
      %p54 = por %p52, %p53
      %p56 = scmp.ne.s32.totalorder %s39, %s55
      %p57 = scmp.eq.s32.totalorder %s19, 0
      %p58 = por %p56, %p57
      %s59 = ssub.s32 %s21, %s28
      %p60 = scmp.eq.s32.totalorder %s59, 0
      %s62 = sadd.s32 %s61, 1
      %s63 = scalar_select %p60, %s61, %s62
      %p66 = pneg %p60
      %p67 = scmp.eq.s32.totalorder %s13, 1
      %p68 = por %p66, %p67
      %p69 = scmp.ne.s32.totalorder %s61, %s64
      %p70 = scmp.eq.s32.totalorder %s13, 0
      %p71 = por %p69, %p70
      %p72 = scmp.ne.s32.totalorder %s61, %s64
      %p73 = scmp.eq.s32.totalorder %s18, 1
      %p74 = por %p72, %p73
      %p75 = scmp.ne.s32.totalorder %s64, %s65
      %p76 = scmp.eq.s32.totalorder %s18, 0
      %p77 = por %p75, %p76
      %p78 = scmp.ne.s32.totalorder %s64, %s65
      %p79 = scmp.eq.s32.totalorder %s19, 1
      %p80 = por %p78, %p79
      %p82 = scmp.ne.s32.totalorder %s65, %s81
      %p83 = scmp.eq.s32.totalorder %s19, 0
      %p84 = por %p82, %p83
      %s85 = ssub.s32 %s21, %s28
      %p86 = scmp.eq.s32.totalorder %s85, 0
      %s88 = sadd.s32 %s87, 1
      %s89 = scalar_select %p86, %s87, %s88
      %p92 = pneg %p86
      %p93 = scmp.eq.s32.totalorder %s13, 1
      %p94 = por %p92, %p93
      %p95 = scmp.ne.s32.totalorder %s87, %s90
      %p96 = scmp.eq.s32.totalorder %s13, 0
      %p97 = por %p95, %p96
      %p98 = scmp.ne.s32.totalorder %s87, %s90
      %p99 = scmp.eq.s32.totalorder %s18, 1
      %p100 = por %p98, %p99
      %p101 = scmp.ne.s32.totalorder %s90, %s91
      %p102 = scmp.eq.s32.totalorder %s18, 0
      %p103 = por %p101, %p102
      %p104 = scmp.ne.s32.totalorder %s90, %s91
      %p105 = scmp.eq.s32.totalorder %s19, 1
      %p106 = por %p104, %p105
      %p108 = scmp.ne.s32.totalorder %s91, %s107
      %p109 = scmp.eq.s32.totalorder %s19, 0
      %p110 = por %p108, %p109
      %s111 = ssub.s32 %s21, %s28
      %p112 = scmp.eq.s32.totalorder %s111, 0
      %s114 = sadd.s32 %s113, 1
      %s115 = scalar_select %p112, %s113, %s114
      %p118 = pneg %p112
      %p119 = scmp.eq.s32.totalorder %s13, 1
      %p120 = por %p118, %p119
      %p121 = scmp.ne.s32.totalorder %s113, %s116
      %p122 = scmp.eq.s32.totalorder %s13, 0
      %p123 = por %p121, %p122
      %p124 = scmp.ne.s32.totalorder %s113, %s116
      %p125 = scmp.eq.s32.totalorder %s18, 1
      %p126 = por %p124, %p125
      %p127 = scmp.ne.s32.totalorder %s116, %s117
      %p128 = scmp.eq.s32.totalorder %s18, 0
      %p129 = por %p127, %p128
      %p130 = scmp.ne.s32.totalorder %s116, %s117
      %p131 = scmp.eq.s32.totalorder %s19, 1
      %p132 = por %p130, %p131
      %p134 = scmp.ne.s32.totalorder %s117, %s133
      %p135 = scmp.eq.s32.totalorder %s19, 0
      %p136 = por %p134, %p135
      %s137 = ssub.s32 %s20, %s32
      %s138 = ssub.s32 %s21, %s28
      %s139 = sor.u32 %s137, %s138
      %p140 = scmp.eq.s32.totalorder %s139, 0
      %s142 = sadd.s32 %s141, 1
      %s143 = scalar_select %p140, %s141, %s142
      %p146 = pneg %p140
      %p147 = scmp.eq.s32.totalorder %s13, 1
      %p148 = por %p146, %p147
      %p149 = scmp.ne.s32.totalorder %s141, %s144
      %p150 = scmp.eq.s32.totalorder %s13, 0
      %p151 = por %p149, %p150
      %p152 = scmp.ne.s32.totalorder %s141, %s144
      %p153 = scmp.eq.s32.totalorder %s18, 1
      %p154 = por %p152, %p153
      %p155 = scmp.ne.s32.totalorder %s144, %s145
      %p156 = scmp.eq.s32.totalorder %s18, 0
      %p157 = por %p155, %p156
      %p158 = scmp.ne.s32.totalorder %s144, %s145
      %p159 = scmp.eq.s32.totalorder %s19, 1
      %p160 = por %p158, %p159
      %p162 = scmp.ne.s32.totalorder %s145, %s161
      %p163 = scmp.eq.s32.totalorder %s19, 0
      %p164 = por %p162, %p163
      %p165 = scmp.le.s32.totalorder 1, %s13
      %p166 = scmp.lt.s32.totalorder %s13, 3
      %p167 = pnand %p165, %p166
      %p168 = pneg %p167
      // Predicated region
      $region9: #{tpu_custom_call.1} parent=5 // pred_check
        _
      $region10: #{tpu_custom_call.1} parent=5 // pred_check_branch
        %170 = sbr.rel (%p167) target = $region12
      $region11: #{tpu_custom_call.1} parent=5 // pred_region
        %s171 = ssub.s32 %s13, 1
        // Predicated region
        $region13: #{tpu_custom_call.1} parent=11 // pred_check
          %p172 = pneg %p77
        $region14: #{tpu_custom_call.1} parent=11 // pred_check_branch
          %174 = sbr.rel (%p172) target = $region16
        $region15: #{tpu_custom_call.1} parent=11 // pred_region
          %p175 = scmp.lt.s32.totalorder %s23, 0
          %s176 = scalar_select %p175, %s23, 0
          %s177 = smul.addr %s176, 4
          %s178 = scalar_lea.vmem %s1, %s177
        $region16: #{tpu_custom_call.1} parent=11 // pred_fallthru
          _
        // Predicated region
        $region17: #{tpu_custom_call.1} parent=11 // pred_check
          %p179 = pneg %p103
        $region18: #{tpu_custom_call.1} parent=11 // pred_check_branch
          %181 = sbr.rel (%p179) target = $region20
        $region19: #{tpu_custom_call.1} parent=11 // pred_region
          %p182 = scmp.lt.s32.totalorder %s23, 0
          %s183 = scalar_select %p182, %s23, 0
          %s184 = scalar_lea.vmem %s2, %s183
        $region20: #{tpu_custom_call.1} parent=11 // pred_fallthru
          _
        // Predicated region
        $region21: #{tpu_custom_call.1} parent=11 // pred_check
          %p185 = pneg %p129
        $region22: #{tpu_custom_call.1} parent=11 // pred_check_branch
          %187 = sbr.rel (%p185) target = $region24
        $region23: #{tpu_custom_call.1} parent=11 // pred_region
          %p188 = scmp.lt.s32.totalorder %s23, 0
          %s189 = scalar_select %p188, %s23, 0
          %s190 = scalar_lea.vmem %s3, %s189
        $region24: #{tpu_custom_call.1} parent=11 // pred_fallthru
          _
      $region12: #{tpu_custom_call.1} parent=5 // pred_fallthru
        _
      %p191 = scmp.lt.s32.totalorder %s13, 2
      // Predicated region
      $region25: #{tpu_custom_call.1} parent=5 // pred_check
        %p192 = pneg %p191
      $region26: #{tpu_custom_call.1} parent=5 // pred_check_branch
        %194 = sbr.rel (%p192) target = $region28
      $region27: #{tpu_custom_call.1} parent=5 // pred_region
        // Predicated region
        $region29: #{tpu_custom_call.1} parent=27 // pred_check
          %p195 = pneg %p45
        $region30: #{tpu_custom_call.1} parent=27 // pred_check_branch
          %197 = sbr.rel (%p195) target = $region32
        $region31: #{tpu_custom_call.1} parent=27 // pred_region
          %s198 = sand.u32 %s35, 1
          %s199 = scalar_lea.sflag [#allocation3], %s198
          %s200 = sand.u32 %s35, 1
          %s201 = smul.addr %s200, 256
          %s202 = scalar_lea.vmem [#allocation2], %s201
          %s203 = smul.u32 32, %s20
          %s205 = ssub.s32 4096, 4096
          %206 = vsyncadd %s199, %s205
          %s207 = smul.addr %s203, 2
          %s208 = smul.addr %s207, 64
          %s209 = scalar_lea.hbm %s0, %s208
          %s210 = sshll.u32 %s202, 4
          %s211 = int_to_ptr.vmem [resolvable:$true] %s210
          %216 = dma.hbm_to_vmem [thread:$0]  %s209, 4096, %s211, %s199, 128, 128, 8
        $region32: #{tpu_custom_call.1} parent=27 // pred_fallthru
          _
      $region28: #{tpu_custom_call.1} parent=5 // pred_fallthru
        _
      %p217 = scmp.le.s32.totalorder 1, %s13
      %p218 = scmp.lt.s32.totalorder %s13, 3
      %p219 = pnand %p217, %p218
      %p220 = pneg %p219
      // Predicated region
      $region33: #{tpu_custom_call.1} parent=5 // pred_check
        _
      $region34: #{tpu_custom_call.1} parent=5 // pred_check_branch
        %222 = sbr.rel (%p219) target = $region36
      $region35: #{tpu_custom_call.1} parent=5 // pred_region
        %s223 = ssub.s32 %s13, 1
        %s224 = sand.u32 %s38, 1
        %s225 = scalar_lea.sflag [#allocation3], %s224
        %s226 = sand.u32 %s38, 1
        %s227 = smul.addr %s226, 256
        %s228 = scalar_lea.vmem [#allocation2], %s227
        // Predicated region
        $region37: #{tpu_custom_call.1} parent=35 // pred_check
          %p229 = pneg %p51
        $region38: #{tpu_custom_call.1} parent=35 // pred_check_branch
          %231 = sbr.rel (%p229) target = $region40
        $region39: #{tpu_custom_call.1} parent=35 // pred_region
          %232 = dma.done %s225, 4096
        $region40: #{tpu_custom_call.1} parent=35 // pred_fallthru
          _
        %s233 = sand.u32 %s38, 1
        %s234 = scalar_lea.sflag [#allocation3], %s233
        %s235 = sand.u32 %s38, 1
        %s236 = smul.addr %s235, 256
        %s237 = scalar_lea.vmem [#allocation2], %s236
        %p238 = pneg %p51
        %p239 = pneg %p48
        %p240 = scmp.lt.s32.totalorder %s23, 0
        %s241 = scalar_select %p240, %s23, 0
        %s242 = smul.addr %s241, 4
        %s243 = scalar_lea.vmem %s1, %s242
        %p244 = pneg %p77
        %p245 = pneg %p74
        %p246 = scmp.lt.s32.totalorder %s23, 0
        %s247 = scalar_select %p246, %s23, 0
        %s248 = scalar_lea.vmem %s2, %s247
        %p249 = pneg %p103
        %p250 = pneg %p100
        %p251 = scmp.lt.s32.totalorder %s23, 0
        %s252 = scalar_select %p251, %s23, 0
        %s253 = scalar_lea.vmem %s3, %s252
        %p254 = pneg %p129
        %p255 = pneg %p126
        %p256 = pneg %p157
        %p257 = pneg %p154
        %s258 = smul.u32 32, %s22
        %p259 = scmp.lt.s32.totalorder %s258, 63
        %s260 = scalar_select %p259, %s258, 63
        %p261 = scmp.lt.s32.totalorder %s23, 0
        %s262 = scalar_select %p261, %s23, 0
        %s263 = sadd.s32 %s262, %s260
        %s264 = smul.addr %s263, 4
        %s265 = scalar_lea.vmem %s4, %s264
        %s266 = smul.u32 32, %s22
        %p267 = scmp.lt.s32.totalorder %s23, 0
        %s268 = scalar_select %p267, %s23, 0
        %s269 = smul.addr %s268, 4
        %s270 = scalar_lea.vmem %s1, %s269
        %p271 = scmp.lt.s32.totalorder %s23, 0
        %s272 = scalar_select %p271, %s23, 0
        %s273 = scalar_lea.vmem %s2, %s272
        %p274 = scmp.lt.s32.totalorder %s23, 0
        %s275 = scalar_select %p274, %s23, 0
        %s276 = scalar_lea.vmem %s3, %s275
        %s277 = smul.u32 32, %s22
        %p278 = scmp.lt.s32.totalorder %s277, 63
        %s279 = scalar_select %p278, %s277, 63
        %p280 = scmp.lt.s32.totalorder %s23, 0
        %s281 = scalar_select %p280, %s23, 0
        %s282 = sadd.s32 %s281, %s279
        %s283 = smul.addr %s282, 4
        %s284 = scalar_lea.vmem %s4, %s283
        %s285 = smul.u32 32, %s22
        %v287 = vld [vmem:[%s228] sm:$0xff]
        %v288 = vld [vmem:[%s228 + $0x8] sm:$0xff]
        %v289 = vld [vmem:[%s228 + $0x10] sm:$0xff]
        %v290 = vld [vmem:[%s228 + $0x18] sm:$0xff]
        %v291 = vld [vmem:[%s228 + $0x20] sm:$0xff]
        %v292 = vld [vmem:[%s228 + $0x28] sm:$0xff]
        %v293 = vld [vmem:[%s228 + $0x30] sm:$0xff]
        %v294 = vld [vmem:[%s228 + $0x38] sm:$0xff]
        %v295 = vld [vmem:[%s228 + $0x40] sm:$0xff]
        %v296 = vld [vmem:[%s228 + $0x48] sm:$0xff]
        %v297 = vld [vmem:[%s228 + $0x50] sm:$0xff]
        %v298 = vld [vmem:[%s228 + $0x58] sm:$0xff]
        %v299 = vld [vmem:[%s228 + $0x60] sm:$0xff]
        %v300 = vld [vmem:[%s228 + $0x68] sm:$0xff]
        %v301 = vld [vmem:[%s228 + $0x70] sm:$0xff]
        %v302 = vld [vmem:[%s228 + $0x78] sm:$0xff]
        %v303 = vld [vmem:[%s228 + $0x80] sm:$0xff]
        %v304 = vld [vmem:[%s228 + $0x88] sm:$0xff]
        %v305 = vld [vmem:[%s228 + $0x90] sm:$0xff]
        %v306 = vld [vmem:[%s228 + $0x98] sm:$0xff]
        %v307 = vld [vmem:[%s228 + $0xa0] sm:$0xff]
        %v308 = vld [vmem:[%s228 + $0xa8] sm:$0xff]
        %v309 = vld [vmem:[%s228 + $0xb0] sm:$0xff]
        %v310 = vld [vmem:[%s228 + $0xb8] sm:$0xff]
        %v311 = vld [vmem:[%s228 + $0xc0] sm:$0xff]
        %v312 = vld [vmem:[%s228 + $0xc8] sm:$0xff]
        %v313 = vld [vmem:[%s228 + $0xd0] sm:$0xff]
        %v314 = vld [vmem:[%s228 + $0xd8] sm:$0xff]
        %v315 = vld [vmem:[%s228 + $0xe0] sm:$0xff]
        %v316 = vld [vmem:[%s228 + $0xe8] sm:$0xff]
        %v317 = vld [vmem:[%s228 + $0xf0] sm:$0xff]
        %v318 = vld [vmem:[%s228 + $0xf8] sm:$0xff]
        %v319 = vld [vmem:[%s270] sm:$0xf]
        %v320 = vld [vmem:[%s270 + $0x4] sm:$0xf]
        %v321 = vld [vmem:[%s270 + $0x8] sm:$0xf]
        %v322 = vld [vmem:[%s270 + $0xc] sm:$0xf]
        %v323 = vld [vmem:[%s270 + $0x10] sm:$0xf]
        %v324 = vld [vmem:[%s270 + $0x14] sm:$0xf]
        %v325 = vld [vmem:[%s270 + $0x18] sm:$0xf]
        %v326 = vld [vmem:[%s270 + $0x1c] sm:$0xf]
        %v327 = vld [vmem:[%s270 + $0x20] sm:$0xf]
        %v328 = vld [vmem:[%s270 + $0x24] sm:$0xf]
        %v329 = vld [vmem:[%s270 + $0x28] sm:$0xf]
        %v330 = vld [vmem:[%s270 + $0x2c] sm:$0xf]
        %v331 = vld [vmem:[%s270 + $0x30] sm:$0xf]
        %v332 = vld [vmem:[%s270 + $0x34] sm:$0xf]
        %v333 = vld [vmem:[%s270 + $0x38] sm:$0xf]
        %v334 = vld [vmem:[%s270 + $0x3c] sm:$0xf]
        %v335 = vld [vmem:[%s270 + $0x40] sm:$0xf]
        %v336 = vld [vmem:[%s270 + $0x44] sm:$0xf]
        %v337 = vld [vmem:[%s270 + $0x48] sm:$0xf]
        %v338 = vld [vmem:[%s270 + $0x4c] sm:$0xf]
        %v339 = vld [vmem:[%s270 + $0x50] sm:$0xf]
        %v340 = vld [vmem:[%s270 + $0x54] sm:$0xf]
        %v341 = vld [vmem:[%s270 + $0x58] sm:$0xf]
        %v342 = vld [vmem:[%s270 + $0x5c] sm:$0xf]
        %v343 = vld [vmem:[%s270 + $0x60] sm:$0xf]
        %v344 = vld [vmem:[%s270 + $0x64] sm:$0xf]
        %v345 = vld [vmem:[%s270 + $0x68] sm:$0xf]
        %v346 = vld [vmem:[%s270 + $0x6c] sm:$0xf]
        %v347 = vld [vmem:[%s270 + $0x70] sm:$0xf]
        %v348 = vld [vmem:[%s270 + $0x74] sm:$0xf]
        %v349 = vld [vmem:[%s270 + $0x78] sm:$0xf]
        %v350 = vld [vmem:[%s270 + $0x7c] sm:$0xf]
        %v383 = vunpack.c.l.b16 %v287
        %v384 = vunpack.c.h.b16 %v287
        %v385 = vunpack.c.l.b16 %v288
        %v386 = vunpack.c.h.b16 %v288
        %v387 = vunpack.c.l.b16 %v289
        %v388 = vunpack.c.h.b16 %v289
        %v389 = vunpack.c.l.b16 %v290
        %v390 = vunpack.c.h.b16 %v290
        %v391 = vunpack.c.l.b16 %v291
        %v392 = vunpack.c.h.b16 %v291
        %v393 = vunpack.c.l.b16 %v292
        %v394 = vunpack.c.h.b16 %v292
        %v395 = vunpack.c.l.b16 %v293
        %v396 = vunpack.c.h.b16 %v293
        %v397 = vunpack.c.l.b16 %v294
        %v398 = vunpack.c.h.b16 %v294
        %v399 = vunpack.c.l.b16 %v295
        %v400 = vunpack.c.h.b16 %v295
        %v401 = vunpack.c.l.b16 %v296
        %v402 = vunpack.c.h.b16 %v296
        %v403 = vunpack.c.l.b16 %v297
        %v404 = vunpack.c.h.b16 %v297
        %v405 = vunpack.c.l.b16 %v298
        %v406 = vunpack.c.h.b16 %v298
        %v407 = vunpack.c.l.b16 %v299
        %v408 = vunpack.c.h.b16 %v299
        %v409 = vunpack.c.l.b16 %v300
        %v410 = vunpack.c.h.b16 %v300
        %v411 = vunpack.c.l.b16 %v301
        %v412 = vunpack.c.h.b16 %v301
        %v413 = vunpack.c.l.b16 %v302
        %v414 = vunpack.c.h.b16 %v302
        %v415 = vunpack.c.l.b16 %v303
        %v416 = vunpack.c.h.b16 %v303
        %v417 = vunpack.c.l.b16 %v304
        %v418 = vunpack.c.h.b16 %v304
        %v419 = vunpack.c.l.b16 %v305
        %v420 = vunpack.c.h.b16 %v305
        %v421 = vunpack.c.l.b16 %v306
        %v422 = vunpack.c.h.b16 %v306
        %v423 = vunpack.c.l.b16 %v307
        %v424 = vunpack.c.h.b16 %v307
        %v425 = vunpack.c.l.b16 %v308
        %v426 = vunpack.c.h.b16 %v308
        %v427 = vunpack.c.l.b16 %v309
        %v428 = vunpack.c.h.b16 %v309
        %v429 = vunpack.c.l.b16 %v310
        %v430 = vunpack.c.h.b16 %v310
        %v431 = vunpack.c.l.b16 %v311
        %v432 = vunpack.c.h.b16 %v311
        %v433 = vunpack.c.l.b16 %v312
        %v434 = vunpack.c.h.b16 %v312
        %v435 = vunpack.c.l.b16 %v313
        %v436 = vunpack.c.h.b16 %v313
        %v437 = vunpack.c.l.b16 %v314
        %v438 = vunpack.c.h.b16 %v314
        %v439 = vunpack.c.l.b16 %v315
        %v440 = vunpack.c.h.b16 %v315
        %v441 = vunpack.c.l.b16 %v316
        %v442 = vunpack.c.h.b16 %v316
        %v443 = vunpack.c.l.b16 %v317
        %v444 = vunpack.c.h.b16 %v317
        %v445 = vunpack.c.l.b16 %v318
        %v446 = vunpack.c.h.b16 %v318
        %v447 = vpack.c.b16 %v385, %v383
        %v448 = vpack.c.b16 %v386, %v384
        %v449 = vpack.c.b16 %v389, %v387
        %v450 = vpack.c.b16 %v390, %v388
        %v451 = vpack.c.b16 %v393, %v391
        %v452 = vpack.c.b16 %v394, %v392
        %v453 = vpack.c.b16 %v397, %v395
        %v454 = vpack.c.b16 %v398, %v396
        %v455 = vpack.c.b16 %v401, %v399
        %v456 = vpack.c.b16 %v402, %v400
        %v457 = vpack.c.b16 %v405, %v403
        %v458 = vpack.c.b16 %v406, %v404
        %v459 = vpack.c.b16 %v409, %v407
        %v460 = vpack.c.b16 %v410, %v408
        %v461 = vpack.c.b16 %v413, %v411
        %v462 = vpack.c.b16 %v414, %v412
        %v463 = vpack.c.b16 %v417, %v415
        %v464 = vpack.c.b16 %v418, %v416
        %v465 = vpack.c.b16 %v421, %v419
        %v466 = vpack.c.b16 %v422, %v420
        %v467 = vpack.c.b16 %v425, %v423
        %v468 = vpack.c.b16 %v426, %v424
        %v469 = vpack.c.b16 %v429, %v427
        %v470 = vpack.c.b16 %v430, %v428
        %v471 = vpack.c.b16 %v433, %v431
        %v472 = vpack.c.b16 %v434, %v432
        %v473 = vpack.c.b16 %v437, %v435
        %v474 = vpack.c.b16 %v438, %v436
        %v475 = vpack.c.b16 %v441, %v439
        %v476 = vpack.c.b16 %v442, %v440
        %v477 = vpack.c.b16 %v445, %v443
        %v478 = vpack.c.b16 %v446, %v444
        %v543 = vunpack.c.l.b16 %v319
        %v544 = vunpack.c.l.b16 %v320
        %v545 = vunpack.c.l.b16 %v321
        %v546 = vunpack.c.l.b16 %v322
        %v547 = vunpack.c.l.b16 %v323
        %v548 = vunpack.c.l.b16 %v324
        %v549 = vunpack.c.l.b16 %v325
        %v550 = vunpack.c.l.b16 %v326
        %v551 = vunpack.c.l.b16 %v327
        %v552 = vunpack.c.l.b16 %v328
        %v553 = vunpack.c.l.b16 %v329
        %v554 = vunpack.c.l.b16 %v330
        %v555 = vunpack.c.l.b16 %v331
        %v556 = vunpack.c.l.b16 %v332
        %v557 = vunpack.c.l.b16 %v333
        %v558 = vunpack.c.l.b16 %v334
        %v559 = vunpack.c.l.b16 %v335
        %v560 = vunpack.c.l.b16 %v336
        %v561 = vunpack.c.l.b16 %v337
        %v562 = vunpack.c.l.b16 %v338
        %v563 = vunpack.c.l.b16 %v339
        %v564 = vunpack.c.l.b16 %v340
        %v565 = vunpack.c.l.b16 %v341
        %v566 = vunpack.c.l.b16 %v342
        %v567 = vunpack.c.l.b16 %v343
        %v568 = vunpack.c.l.b16 %v344
        %v569 = vunpack.c.l.b16 %v345
        %v570 = vunpack.c.l.b16 %v346
        %v571 = vunpack.c.l.b16 %v347
        %v572 = vunpack.c.l.b16 %v348
        %v573 = vunpack.c.l.b16 %v349
        %v574 = vunpack.c.l.b16 %v350
        %v575 = vpack.c.b16 %v544, %v543
        %v576 = vpack.c.b16 %v546, %v545
        %v577 = vpack.c.b16 %v548, %v547
        %v578 = vpack.c.b16 %v550, %v549
        %v579 = vpack.c.b16 %v552, %v551
        %v580 = vpack.c.b16 %v554, %v553
        %v581 = vpack.c.b16 %v556, %v555
        %v582 = vpack.c.b16 %v558, %v557
        %v583 = vpack.c.b16 %v560, %v559
        %v584 = vpack.c.b16 %v562, %v561
        %v585 = vpack.c.b16 %v564, %v563
        %v586 = vpack.c.b16 %v566, %v565
        %v587 = vpack.c.b16 %v568, %v567
        %v588 = vpack.c.b16 %v570, %v569
        %v589 = vpack.c.b16 %v572, %v571
        %v590 = vpack.c.b16 %v574, %v573
        %607 = vmatprep.subr.bf16.mxu0 0
        %608 = vmatpush1.bf16.msra.mxu0 %v575
        %609 = vmatprep.subr.bf16.mxu0 0
        %610 = vmatpush1.bf16.msra.mxu0 %v576
        %611 = vmatprep.subr.bf16.mxu0 0
        %612 = vmatpush1.bf16.msra.mxu0 %v577
        %613 = vmatprep.subr.bf16.mxu0 0
        %614 = vmatpush1.bf16.msra.mxu0 %v578
        %615 = vmatprep.subr.bf16.mxu0 0
        %616 = vmatpush1.bf16.msra.mxu0 %v579
        %617 = vmatprep.subr.bf16.mxu0 0
        %618 = vmatpush1.bf16.msra.mxu0 %v580
        %619 = vmatprep.subr.bf16.mxu0 0
        %620 = vmatpush1.bf16.msra.mxu0 %v581
        %621 = vmatprep.subr.bf16.mxu0 0
        %622 = vmatpush1.bf16.msra.mxu0 %v582
        %623 = vmatprep.subr.bf16.mxu0 0
        %624 = vmatpush1.bf16.msra.mxu0 %v583
        %625 = vmatprep.subr.bf16.mxu0 0
        %626 = vmatpush1.bf16.msra.mxu0 %v584
        %627 = vmatprep.subr.bf16.mxu0 0
        %628 = vmatpush1.bf16.msra.mxu0 %v585
        %629 = vmatprep.subr.bf16.mxu0 0
        %630 = vmatpush1.bf16.msra.mxu0 %v586
        %631 = vmatprep.subr.bf16.mxu0 0
        %632 = vmatpush1.bf16.msra.mxu0 %v587
        %633 = vmatprep.subr.bf16.mxu0 0
        %634 = vmatpush1.bf16.msra.mxu0 %v588
        %635 = vmatprep.subr.bf16.mxu0 0
        %636 = vmatpush1.bf16.msra.mxu0 %v589
        %637 = vmatprep.subr.bf16.mxu0 0
        %638 = vmatpush1.bf16.msra.mxu0 %v590
        %639 = vmatprep.mubr.bf16.mxu0 %v448
        %640 = vmatmul.mubr.bf16.gmra.mrb[0].mxu0 %v447
        %v641 = vpop.f32.mrb[0].mxu0
        %v642 = vadd.f32 0.0, %v641
        %v643 = vpop.f32.mrb[0].mxu0
        %v644 = vpop.f32.mrb[0].mxu0
        %v645 = vadd.f32 0.0, %v644
        %v646 = vpop.f32.mrb[0].mxu0
        %647 = vmatprep.mubr.bf16.mxu0 %v450
        %648 = vmatmul.mubr.bf16.gmra.mrb[0].mxu0 %v449
        %v649 = vpop.f32.mrb[0].mxu0
        %v650 = vadd.f32 0.0, %v649
        %v651 = vpop.f32.mrb[0].mxu0
        %v652 = vpop.f32.mrb[0].mxu0
        %v653 = vadd.f32 0.0, %v652
        %v654 = vpop.f32.mrb[0].mxu0
        %655 = vmatprep.mubr.bf16.mxu0 %v452
        %656 = vmatmul.mubr.bf16.gmra.mrb[0].mxu0 %v451
        %v657 = vpop.f32.mrb[0].mxu0
        %v658 = vadd.f32 0.0, %v657
        %v659 = vpop.f32.mrb[0].mxu0
        %v660 = vpop.f32.mrb[0].mxu0
        %v661 = vadd.f32 0.0, %v660
        %v662 = vpop.f32.mrb[0].mxu0
        %663 = vmatprep.mubr.bf16.mxu0 %v454
        %664 = vmatmul.mubr.bf16.gmra.mrb[0].mxu0 %v453
        %v665 = vpop.f32.mrb[0].mxu0
        %v666 = vadd.f32 0.0, %v665
        %v667 = vpop.f32.mrb[0].mxu0
        %v668 = vpop.f32.mrb[0].mxu0
        %v669 = vadd.f32 0.0, %v668
        %v670 = vpop.f32.mrb[0].mxu0
        %671 = vmatprep.mubr.bf16.mxu0 %v456
        %672 = vmatmul.mubr.bf16.gmra.mrb[0].mxu0 %v455
        %v673 = vpop.f32.mrb[0].mxu0
        %v674 = vadd.f32 0.0, %v673
        %v675 = vpop.f32.mrb[0].mxu0
        %v676 = vpop.f32.mrb[0].mxu0
        %v677 = vadd.f32 0.0, %v676
        %v678 = vpop.f32.mrb[0].mxu0
        %679 = vmatprep.mubr.bf16.mxu0 %v458
        %680 = vmatmul.mubr.bf16.gmra.mrb[0].mxu0 %v457
        %v681 = vpop.f32.mrb[0].mxu0
        %v682 = vadd.f32 0.0, %v681
        %v683 = vpop.f32.mrb[0].mxu0
        %v684 = vpop.f32.mrb[0].mxu0
        %v685 = vadd.f32 0.0, %v684
        %v686 = vpop.f32.mrb[0].mxu0
        %687 = vmatprep.mubr.bf16.mxu0 %v460
        %688 = vmatmul.mubr.bf16.gmra.mrb[0].mxu0 %v459
        %v689 = vpop.f32.mrb[0].mxu0
        %v690 = vadd.f32 0.0, %v689
        %v691 = vpop.f32.mrb[0].mxu0
        %v692 = vpop.f32.mrb[0].mxu0
        %v693 = vadd.f32 0.0, %v692
        %v694 = vpop.f32.mrb[0].mxu0
        %695 = vmatprep.mubr.bf16.mxu0 %v462
        %696 = vmatmul.mubr.bf16.gmra.mrb[0].mxu0 %v461
        %v697 = vpop.f32.mrb[0].mxu0
        %v698 = vadd.f32 0.0, %v697
        %v699 = vpop.f32.mrb[0].mxu0
        %v700 = vpop.f32.mrb[0].mxu0
        %v701 = vadd.f32 0.0, %v700
        %v702 = vpop.f32.mrb[0].mxu0
        %703 = vmatprep.mubr.bf16.mxu0 %v464
        %704 = vmatmul.mubr.bf16.gmra.mrb[0].mxu0 %v463
        %v705 = vpop.f32.mrb[0].mxu0
        %v706 = vadd.f32 0.0, %v705
        %v707 = vpop.f32.mrb[0].mxu0
        %v708 = vpop.f32.mrb[0].mxu0
        %v709 = vadd.f32 0.0, %v708
        %v710 = vpop.f32.mrb[0].mxu0
        %711 = vmatprep.mubr.bf16.mxu0 %v466
        %712 = vmatmul.mubr.bf16.gmra.mrb[0].mxu0 %v465
        %v713 = vpop.f32.mrb[0].mxu0
        %v714 = vadd.f32 0.0, %v713
        %v715 = vpop.f32.mrb[0].mxu0
        %v716 = vpop.f32.mrb[0].mxu0
        %v717 = vadd.f32 0.0, %v716
        %v718 = vpop.f32.mrb[0].mxu0
        %719 = vmatprep.mubr.bf16.mxu0 %v468
        %720 = vmatmul.mubr.bf16.gmra.mrb[0].mxu0 %v467
        %v721 = vpop.f32.mrb[0].mxu0
        %v722 = vadd.f32 0.0, %v721
        %v723 = vpop.f32.mrb[0].mxu0
        %v724 = vpop.f32.mrb[0].mxu0
        %v725 = vadd.f32 0.0, %v724
        %v726 = vpop.f32.mrb[0].mxu0
        %727 = vmatprep.mubr.bf16.mxu0 %v470
        %728 = vmatmul.mubr.bf16.gmra.mrb[0].mxu0 %v469
        %v729 = vpop.f32.mrb[0].mxu0
        %v730 = vadd.f32 0.0, %v729
        %v731 = vpop.f32.mrb[0].mxu0
        %v732 = vpop.f32.mrb[0].mxu0
        %v733 = vadd.f32 0.0, %v732
        %v734 = vpop.f32.mrb[0].mxu0
        %735 = vmatprep.mubr.bf16.mxu0 %v472
        %736 = vmatmul.mubr.bf16.gmra.mrb[0].mxu0 %v471
        %v737 = vpop.f32.mrb[0].mxu0
        %v738 = vadd.f32 0.0, %v737
        %v739 = vpop.f32.mrb[0].mxu0
        %v740 = vpop.f32.mrb[0].mxu0
        %v741 = vadd.f32 0.0, %v740
        %v742 = vpop.f32.mrb[0].mxu0
        %743 = vmatprep.mubr.bf16.mxu0 %v474
        %744 = vmatmul.mubr.bf16.gmra.mrb[0].mxu0 %v473
        %v745 = vpop.f32.mrb[0].mxu0
        %v746 = vadd.f32 0.0, %v745
        %v747 = vpop.f32.mrb[0].mxu0
        %v748 = vpop.f32.mrb[0].mxu0
        %v749 = vadd.f32 0.0, %v748
        %v750 = vpop.f32.mrb[0].mxu0
        %751 = vmatprep.mubr.bf16.mxu0 %v476
        %752 = vmatmul.mubr.bf16.gmra.mrb[0].mxu0 %v475
        %v753 = vpop.f32.mrb[0].mxu0
        %v754 = vadd.f32 0.0, %v753
        %v755 = vpop.f32.mrb[0].mxu0
        %v756 = vpop.f32.mrb[0].mxu0
        %v757 = vadd.f32 0.0, %v756
        %v758 = vpop.f32.mrb[0].mxu0
        %759 = vmatprep.mubr.bf16.mxu0 %v478
        %760 = vmatmul.mubr.bf16.gmra.mrb[0].mxu0 %v477
        %v761 = vpop.f32.mrb[0].mxu0
        %v762 = vadd.f32 0.0, %v761
        %v763 = vpop.f32.mrb[0].mxu0
        %v764 = vpop.f32.mrb[0].mxu0
        %v765 = vadd.f32 0.0, %v764
        %v766 = vpop.f32.mrb[0].mxu0
        %767 = vdwg.mxu0
        %v768 = vld [vmem:[%s273] sm:$0x1]
        %v770 = vlaneseq
        %v771 = vshrl.u32 %v770, 7
        %v772 = vsub.s32 0, %v771
        %v773 = vrot.slane %v768, %v772
        %v775 = vmul.f32 %v642, %v773
        %v776 = vmul.f32 %v645, %v773
        %v777 = vmul.f32 %v650, %v773
        %v778 = vmul.f32 %v653, %v773
        %v779 = vmul.f32 %v658, %v773
        %v780 = vmul.f32 %v661, %v773
        %v781 = vmul.f32 %v666, %v773
        %v782 = vmul.f32 %v669, %v773
        %v783 = vmul.f32 %v674, %v773
        %v784 = vmul.f32 %v677, %v773
        %v785 = vmul.f32 %v682, %v773
        %v786 = vmul.f32 %v685, %v773
        %v787 = vmul.f32 %v690, %v773
        %v788 = vmul.f32 %v693, %v773
        %v789 = vmul.f32 %v698, %v773
        %v790 = vmul.f32 %v701, %v773
        %v791 = vmul.f32 %v706, %v773
        %v792 = vmul.f32 %v709, %v773
        %v793 = vmul.f32 %v714, %v773
        %v794 = vmul.f32 %v717, %v773
        %v795 = vmul.f32 %v722, %v773
        %v796 = vmul.f32 %v725, %v773
        %v797 = vmul.f32 %v730, %v773
        %v798 = vmul.f32 %v733, %v773
        %v799 = vmul.f32 %v738, %v773
        %v800 = vmul.f32 %v741, %v773
        %v801 = vmul.f32 %v746, %v773
        %v802 = vmul.f32 %v749, %v773
        %v803 = vmul.f32 %v754, %v773
        %v804 = vmul.f32 %v757, %v773
        %v805 = vmul.f32 %v762, %v773
        %v806 = vmul.f32 %v765, %v773
        %v807 = vld [vmem:[%s276] sm:$0x1]
        %v809 = vlaneseq
        %v810 = vshrl.u32 %v809, 7
        %v811 = vsub.s32 0, %v810
        %v812 = vrot.slane %v807, %v811
        %v814 = vadd.f32 %v775, %v812
        %v815 = vadd.f32 %v776, %v812
        %v816 = vadd.f32 %v777, %v812
        %v817 = vadd.f32 %v778, %v812
        %v818 = vadd.f32 %v779, %v812
        %v819 = vadd.f32 %v780, %v812
        %v820 = vadd.f32 %v781, %v812
        %v821 = vadd.f32 %v782, %v812
        %v822 = vadd.f32 %v783, %v812
        %v823 = vadd.f32 %v784, %v812
        %v824 = vadd.f32 %v785, %v812
        %v825 = vadd.f32 %v786, %v812
        %v826 = vadd.f32 %v787, %v812
        %v827 = vadd.f32 %v788, %v812
        %v828 = vadd.f32 %v789, %v812
        %v829 = vadd.f32 %v790, %v812
        %v830 = vadd.f32 %v791, %v812
        %v831 = vadd.f32 %v792, %v812
        %v832 = vadd.f32 %v793, %v812
        %v833 = vadd.f32 %v794, %v812
        %v834 = vadd.f32 %v795, %v812
        %v835 = vadd.f32 %v796, %v812
        %v836 = vadd.f32 %v797, %v812
        %v837 = vadd.f32 %v798, %v812
        %v838 = vadd.f32 %v799, %v812
        %v839 = vadd.f32 %v800, %v812
        %v840 = vadd.f32 %v801, %v812
        %v841 = vadd.f32 %v802, %v812
        %v842 = vadd.f32 %v803, %v812
        %v843 = vadd.f32 %v804, %v812
        %v844 = vadd.f32 %v805, %v812
        %v845 = vadd.f32 %v806, %v812
        %v846 = vpack.c.bf16 %v815, %v814
        %v847 = vpack.c.bf16 %v817, %v816
        %v848 = vpack.c.bf16 %v819, %v818
        %v849 = vpack.c.bf16 %v821, %v820
        %v850 = vpack.c.bf16 %v823, %v822
        %v851 = vpack.c.bf16 %v825, %v824
        %v852 = vpack.c.bf16 %v827, %v826
        %v853 = vpack.c.bf16 %v829, %v828
        %v854 = vpack.c.bf16 %v831, %v830
        %v855 = vpack.c.bf16 %v833, %v832
        %v856 = vpack.c.bf16 %v835, %v834
        %v857 = vpack.c.bf16 %v837, %v836
        %v858 = vpack.c.bf16 %v839, %v838
        %v859 = vpack.c.bf16 %v841, %v840
        %v860 = vpack.c.bf16 %v843, %v842
        %v861 = vpack.c.bf16 %v845, %v844
        %v878 = vunpack.c.l.b16 %v846
        %v879 = vunpack.c.h.b16 %v846
        %v880 = vunpack.c.l.b16 %v847
        %v881 = vunpack.c.h.b16 %v847
        %v882 = vunpack.c.l.b16 %v848
        %v883 = vunpack.c.h.b16 %v848
        %v884 = vunpack.c.l.b16 %v849
        %v885 = vunpack.c.h.b16 %v849
        %v886 = vunpack.c.l.b16 %v850
        %v887 = vunpack.c.h.b16 %v850
        %v888 = vunpack.c.l.b16 %v851
        %v889 = vunpack.c.h.b16 %v851
        %v890 = vunpack.c.l.b16 %v852
        %v891 = vunpack.c.h.b16 %v852
        %v892 = vunpack.c.l.b16 %v853
        %v893 = vunpack.c.h.b16 %v853
        %v894 = vunpack.c.l.b16 %v854
        %v895 = vunpack.c.h.b16 %v854
        %v896 = vunpack.c.l.b16 %v855
        %v897 = vunpack.c.h.b16 %v855
        %v898 = vunpack.c.l.b16 %v856
        %v899 = vunpack.c.h.b16 %v856
        %v900 = vunpack.c.l.b16 %v857
        %v901 = vunpack.c.h.b16 %v857
        %v902 = vunpack.c.l.b16 %v858
        %v903 = vunpack.c.h.b16 %v858
        %v904 = vunpack.c.l.b16 %v859
        %v905 = vunpack.c.h.b16 %v859
        %v906 = vunpack.c.l.b16 %v860
        %v907 = vunpack.c.h.b16 %v860
        %v908 = vunpack.c.l.b16 %v861
        %v909 = vunpack.c.h.b16 %v861
        %v910 = vpack.c.b16 %v878, %v878
        %v911 = vpack.c.b16 %v879, %v879
        %v912 = vpack.c.b16 %v880, %v880
        %v913 = vpack.c.b16 %v881, %v881
        %v914 = vpack.c.b16 %v882, %v882
        %v915 = vpack.c.b16 %v883, %v883
        %v916 = vpack.c.b16 %v884, %v884
        %v917 = vpack.c.b16 %v885, %v885
        %v918 = vpack.c.b16 %v886, %v886
        %v919 = vpack.c.b16 %v887, %v887
        %v920 = vpack.c.b16 %v888, %v888
        %v921 = vpack.c.b16 %v889, %v889
        %v922 = vpack.c.b16 %v890, %v890
        %v923 = vpack.c.b16 %v891, %v891
        %v924 = vpack.c.b16 %v892, %v892
        %v925 = vpack.c.b16 %v893, %v893
        %v926 = vpack.c.b16 %v894, %v894
        %v927 = vpack.c.b16 %v895, %v895
        %v928 = vpack.c.b16 %v896, %v896
        %v929 = vpack.c.b16 %v897, %v897
        %v930 = vpack.c.b16 %v898, %v898
        %v931 = vpack.c.b16 %v899, %v899
        %v932 = vpack.c.b16 %v900, %v900
        %v933 = vpack.c.b16 %v901, %v901
        %v934 = vpack.c.b16 %v902, %v902
        %v935 = vpack.c.b16 %v903, %v903
        %v936 = vpack.c.b16 %v904, %v904
        %v937 = vpack.c.b16 %v905, %v905
        %v938 = vpack.c.b16 %v906, %v906
        %v939 = vpack.c.b16 %v907, %v907
        %v940 = vpack.c.b16 %v908, %v908
        %v941 = vpack.c.b16 %v909, %v909
        %vm974 = vcmask 519168
        %975 = vst.msk [vmem:[%s284] sm:$0xf] %vm974, %v910
        %976 = vst.msk [vmem:[%s284 + $0x4] sm:$0xf] %vm974, %v911
        %977 = vst.msk [vmem:[%s284 + $0x8] sm:$0xf] %vm974, %v912
        %978 = vst.msk [vmem:[%s284 + $0xc] sm:$0xf] %vm974, %v913
        %979 = vst.msk [vmem:[%s284 + $0x10] sm:$0xf] %vm974, %v914
        %980 = vst.msk [vmem:[%s284 + $0x14] sm:$0xf] %vm974, %v915
        %981 = vst.msk [vmem:[%s284 + $0x18] sm:$0xf] %vm974, %v916
        %982 = vst.msk [vmem:[%s284 + $0x1c] sm:$0xf] %vm974, %v917
        %983 = vst.msk [vmem:[%s284 + $0x20] sm:$0xf] %vm974, %v918
        %984 = vst.msk [vmem:[%s284 + $0x24] sm:$0xf] %vm974, %v919
        %985 = vst.msk [vmem:[%s284 + $0x28] sm:$0xf] %vm974, %v920
        %986 = vst.msk [vmem:[%s284 + $0x2c] sm:$0xf] %vm974, %v921
        %987 = vst.msk [vmem:[%s284 + $0x30] sm:$0xf] %vm974, %v922
        %988 = vst.msk [vmem:[%s284 + $0x34] sm:$0xf] %vm974, %v923
        %989 = vst.msk [vmem:[%s284 + $0x38] sm:$0xf] %vm974, %v924
        %990 = vst.msk [vmem:[%s284 + $0x3c] sm:$0xf] %vm974, %v925
        %991 = vst.msk [vmem:[%s284 + $0x40] sm:$0xf] %vm974, %v926
        %992 = vst.msk [vmem:[%s284 + $0x44] sm:$0xf] %vm974, %v927
        %993 = vst.msk [vmem:[%s284 + $0x48] sm:$0xf] %vm974, %v928
        %994 = vst.msk [vmem:[%s284 + $0x4c] sm:$0xf] %vm974, %v929
        %995 = vst.msk [vmem:[%s284 + $0x50] sm:$0xf] %vm974, %v930
        %996 = vst.msk [vmem:[%s284 + $0x54] sm:$0xf] %vm974, %v931
        %997 = vst.msk [vmem:[%s284 + $0x58] sm:$0xf] %vm974, %v932
        %998 = vst.msk [vmem:[%s284 + $0x5c] sm:$0xf] %vm974, %v933
        %999 = vst.msk [vmem:[%s284 + $0x60] sm:$0xf] %vm974, %v934
        %1000 = vst.msk [vmem:[%s284 + $0x64] sm:$0xf] %vm974, %v935
        %1001 = vst.msk [vmem:[%s284 + $0x68] sm:$0xf] %vm974, %v936
        %1002 = vst.msk [vmem:[%s284 + $0x6c] sm:$0xf] %vm974, %v937
        %1003 = vst.msk [vmem:[%s284 + $0x70] sm:$0xf] %vm974, %v938
        %1004 = vst.msk [vmem:[%s284 + $0x74] sm:$0xf] %vm974, %v939
        %1005 = vst.msk [vmem:[%s284 + $0x78] sm:$0xf] %vm974, %v940
        %1006 = vst.msk [vmem:[%s284 + $0x7c] sm:$0xf] %vm974, %v941
        %s1007 = smul.u32 32, %s22
        %p1008 = scmp.lt.s32.totalorder %s1007, 63
        %s1009 = scalar_select %p1008, %s1007, 63
        %p1010 = scmp.lt.s32.totalorder %s23, 0
        %s1011 = scalar_select %p1010, %s23, 0
        %s1012 = sadd.s32 %s1011, %s1009
        %s1013 = smul.addr %s1012, 4
        %s1014 = scalar_lea.vmem %s4, %s1013
        // Predicated region
        $region41: #{tpu_custom_call.1} parent=35 // pred_check
          %p1015 = pneg %p154
        $region42: #{tpu_custom_call.1} parent=35 // pred_check_branch
          %1017 = sbr.rel (%p1015) target = $region44
        $region43: #{tpu_custom_call.1} parent=35 // pred_region
          %s1018 = smul.u32 32, %s22
        $region44: #{tpu_custom_call.1} parent=35 // pred_fallthru
          _
      $region36: #{tpu_custom_call.1} parent=5 // pred_fallthru
        _
      %p1019 = scmp.le.s32.totalorder 2, %s13
      // Predicated region
      $region45: #{tpu_custom_call.1} parent=5 // pred_check
        %p1020 = pneg %p1019
      $region46: #{tpu_custom_call.1} parent=5 // pred_check_branch
        %1022 = sbr.rel (%p1020) target = $region48
      $region47: #{tpu_custom_call.1} parent=5 // pred_region
        %s1023 = ssub.s32 %s13, 2
        // Predicated region
        $region49: #{tpu_custom_call.1} parent=47 // pred_check
          %p1024 = pneg %p160
        $region50: #{tpu_custom_call.1} parent=47 // pred_check_branch
          %1026 = sbr.rel (%p1024) target = $region52
        $region51: #{tpu_custom_call.1} parent=47 // pred_region
          %s1027 = smul.u32 32, %s24
          %p1028 = scmp.lt.s32.totalorder %s1027, 63
          %s1029 = scalar_select %p1028, %s1027, 63
          %p1030 = scmp.lt.s32.totalorder %s25, 0
          %s1031 = scalar_select %p1030, %s25, 0
          %s1032 = sadd.s32 %s1031, %s1029
          %s1033 = smul.addr %s1032, 4
          %s1034 = scalar_lea.vmem %s4, %s1033
        $region52: #{tpu_custom_call.1} parent=47 // pred_fallthru
          _
      $region48: #{tpu_custom_call.1} parent=5 // pred_fallthru
        _
    $region6: #{tpu_custom_call.1} parent=1 // loop_footer
      %s17 = sadd.s32 1, %s13
    $region7: #{tpu_custom_call.1} parent=1 // loop_footer_branch
      %12 = sbr.rel target = $region3
    $region8: #{tpu_custom_call.1} parent=1 // loop_exit
      _
    %1035 = vsyncpa [#allocation3], 1
    %s1036 = scalar_lea.sflag [#allocation3], 1
    %1037 = vsyncpa %s1036, 1

</llo_original>
